<compile_context>
chip_gen: v6e
topology: v6e:2x2x1
jax: 0.10.0
libtpu: 0.0.40
codegen_flags: <defaults>
</compile_context>

<pallas_src>
import jax
import jax.numpy as jnp
from jax.experimental import pallas as pl
from jax.experimental.pallas import tpu as pltpu


def _round_up(x, m):
    return (x + m - 1) // m * m


# ---------------------------------------------------------------------------
# Fused kernel: (conv_noisy + conv_refer) -> PReLU -> 1x1 conv + bias -> ReLU
# for one (batch, M-tile) grid step.  The conv-H taps are handled here via
# shifted windows of the flattened (time*Wout) axis ("in-kernel im2col").
# ---------------------------------------------------------------------------
def _make_fused_kernel(wout, kh, tile_m):
    halo = (kh - 1) * wout

    def kernel(alpha_ref, wn_ref, wr_ref, w2_ref, b_ref, xn_ref, xr_ref, o_ref):
        a = alpha_ref[0]                           # shared PReLU alpha (SMEM scalar)
        xn = xn_ref[...]                           # [C*KW, tile_m + halo]  bf16
        xr = xr_ref[...]
        wn = wn_ref[...]                           # [KH, Bc, C*KW]         bf16
        wr = wr_ref[...]
        bc = wn.shape[1]

        # z = conv_noisy(noisy) + conv_refer(refer), f32 MXU accumulation.
        # TODO(synk): DPRNN submodule source was not provided; the elementwise
        # sum of the two conv feature maps is a shape-preserving placeholder for
        # self.dprnn(x, y) (it is also what makes this single-kernel fusion legal).
        z = jnp.zeros((bc, tile_m), jnp.float32)
        for i in range(kh):                        # 5 kernel-H taps, shifted windows
            lo = i * wout
            z = z + jnp.dot(wn[i], xn[:, lo:lo + tile_m],
                            preferred_element_type=jnp.float32)
            z = z + jnp.dot(wr[i], xr[:, lo:lo + tile_m],
                            preferred_element_type=jnp.float32)

        x = jnp.where(z > 0, z, a * z)             # PReLU (single shared parameter)
        # 1x1 conv over channels + bias: bf16 MXU dot, f32 accumulation.
        y = jnp.dot(w2_ref[...], x.astype(jnp.bfloat16),
                    preferred_element_type=jnp.float32) + b_ref[...]
        o_ref[...] = jnp.maximum(y, 0.0)           # mask_nonlinear='relu'

    return kernel


# ---------------------------------------------------------------------------
# Forward wrapper
# ---------------------------------------------------------------------------
def dprnn_me_forward(noisy, refer, params, *, tile_m=None):
    """DPRNN_ME.forward(noisy, refer) (inference=False)."""
    KH, KW = 5, 5
    SW = 2                                          # conv stride = [1, 2]

    # F.pad(x, (0, 0, 4, 0)) pads the H (dim -2) axis with 4 zeros at the start.
    xn = jnp.pad(noisy, ((0, 0), (0, 0), (KH - 1, 0), (0, 0)))
    xr = jnp.pad(refer, ((0, 0), (0, 0), (KH - 1, 0), (0, 0)))

    Bb, C, Hp, W = xn.shape
    Wout = (W - KW) // SW + 1
    T = Hp - (KH - 1)                               # output time steps (stride_h = 1)
    M = T * Wout                                    # flattened output spatial / batch
    halo = (KH - 1) * Wout

    # Width-direction-only patch extraction, flattened over (t', w):
    # [B, C, Hp, W] -> [B, C*KW, Hp*Wout]; K ordered (c, j) to match the weights.
    def w_im2col(x):
        cols = [x[:, :, :, j: j + SW * (Wout - 1) + 1: SW] for j in range(KW)]
        p = jnp.stack(cols, axis=2)                 # [B, C, KW, Hp, Wout]
        return p.reshape(Bb, C * KW, Hp * Wout)

    pn = w_im2col(xn).astype(jnp.bfloat16)
    pr = w_im2col(xr).astype(jnp.bfloat16)

    # Big lane-dense tiles over the flattened output axis (multiple of 128).
    if tile_m is None:
        tile_m = min(_round_up(M, 128), 8192)
    tile_m = _round_up(tile_m, 128)
    n_tiles = pl.cdiv(M, tile_m)
    m_pad = n_tiles * tile_m

    # Overlapping (halo = 4*Wout columns) tiles so every grid step sees all five
    # kernel-H taps without out-of-block reads; duplication is only halo/tile_m.
    def to_tiles(p):
        p = jnp.pad(p, ((0, 0), (0, 0), (0, m_pad + halo - p.shape[-1])))
        return jnp.stack([p[:, :, k * tile_m: k * tile_m + tile_m + halo]
                          for k in range(n_tiles)], axis=1)  # [B, n_tiles, CKW, tile+halo]

    pn_t = to_tiles(pn)
    pr_t = to_tiles(pr)

    # Conv weights regrouped per kernel-H tap: [Bc, C, KH, KW] -> [KH, Bc, C*KW].
    w_n = params["conv_noisy_w"]
    w_r = params["conv_refer_w"]
    Bc = w_n.shape[0]

    def taps(w):
        return jnp.transpose(w, (2, 0, 1, 3)).reshape(KH, Bc, C * KW).astype(jnp.bfloat16)

    wn_t = taps(w_n)
    wr_t = taps(w_r)

    w_mask = params["mask_conv_w"]                  # [N, Bc, 1, 1]
    Nc = w_mask.shape[0]
    w2 = w_mask.reshape(Nc, Bc).astype(jnp.bfloat16)
    b2 = params["mask_conv_b"].reshape(Nc, 1).astype(jnp.float32)
    alpha = jnp.asarray(params["prelu_alpha"], jnp.float32).reshape(1)

    kernel = _make_fused_kernel(Wout, KH, tile_m)
    ckw = C * KW

    out = pl.pallas_call(
        kernel,
        out_shape=jax.ShapeDtypeStruct((Bb, Nc, m_pad), jnp.float32),
        grid_spec=pltpu.PrefetchScalarGridSpec(
            num_scalar_prefetch=0,
            grid=(Bb, n_tiles),
            in_specs=[
                pl.BlockSpec(memory_space=pltpu.MemorySpace.SMEM),        # PReLU alpha
                pl.BlockSpec((KH, Bc, ckw), lambda b, k: (0, 0, 0)),      # noisy conv taps (resident)
                pl.BlockSpec((KH, Bc, ckw), lambda b, k: (0, 0, 0)),      # refer conv taps (resident)
                pl.BlockSpec((Nc, Bc), lambda b, k: (0, 0)),              # 1x1 conv weight (resident)
                pl.BlockSpec((Nc, 1), lambda b, k: (0, 0)),               # 1x1 conv bias (resident)
                pl.BlockSpec((None, None, ckw, tile_m + halo),
                             lambda b, k: (b, k, 0, 0)),                  # noisy slab tile (streamed)
                pl.BlockSpec((None, None, ckw, tile_m + halo),
                             lambda b, k: (b, k, 0, 0)),                  # refer slab tile (streamed)
            ],
            out_specs=pl.BlockSpec((None, Nc, tile_m),
                                   lambda b, k: (b, 0, k)),               # lane-dense over M
        ),
        compiler_params=pltpu.CompilerParams(
            dimension_semantics=("parallel", "parallel"),
        ),
    )(alpha, wn_t, wr_t, w2, b2, pn_t, pr_t)

    # [B, N, m_pad] -> [B, N, T, Wout]; already NCHW ordered, just drop padding.
    return out[:, :, :M].reshape(Bb, Nc, T, Wout)


# ---------------------------------------------------------------------------
# Main
# ---------------------------------------------------------------------------
if __name__ == "__main__":
    # Module hyperparameters (small): N output channels, B bottleneck channels.
    N, B, H, R, K = 4, 8, 32, 2, 8   # H, R, K belong to the (unavailable) DPRNN block

    key = jax.random.PRNGKey(0)
    k_noisy, k_refer, k_cn, k_cr, k_mw, k_mb = jax.random.split(key, 6)

    # Inputs: NCHW, 2 channels (real/imag STFT), time=16, freq=16.
    noisy = jax.random.normal(k_noisy, (2, 2, 16, 16), jnp.float32)
    refer = jax.random.normal(k_refer, (2, 2, 16, 16), jnp.float32)

    params = {
        # nn.Conv2d(2, B, [5, 5], [1, 2], bias=False) -> weight [B, 2, 5, 5]
        "conv_noisy_w": 0.1 * jax.random.normal(k_cn, (B, 2, 5, 5), jnp.float32),
        "conv_refer_w": 0.1 * jax.random.normal(k_cr, (B, 2, 5, 5), jnp.float32),
        # nn.PReLU() default: single shared parameter, init 0.25
        "prelu_alpha": jnp.float32(0.25),
        # nn.Conv2d(B, N, 1) -> weight [N, B, 1, 1], bias [N]
        "mask_conv_w": 0.1 * jax.random.normal(k_mw, (N, B, 1, 1), jnp.float32),
        "mask_conv_b": 0.1 * jax.random.normal(k_mb, (N,), jnp.float32),
    }

    out = jax.jit(dprnn_me_forward)(noisy, refer, params)
    jax.block_until_ready(out)

    # Expected shape: [batch, N, T, F'] = [2, 4, 16, 6]
    assert out.shape == (2, N, 16, 6), out.shape
    assert out.dtype == jnp.float32
    assert bool(jnp.all(out >= 0.0))  # relu mask output is non-negative
    print("KERNEL_OK")
</pallas_src>

<mosaic_0001>
module attributes {stable_mosaic.version = 11 : i64} {
  func.func @kernel(%arg0: i32, %arg1: i32, %arg2: memref<1xf32, #tpu.memory_space<smem>>, %arg3: memref<5x8x10xbf16, #tpu.memory_space<vmem>>, %arg4: memref<5x8x10xbf16, #tpu.memory_space<vmem>>, %arg5: memref<4x8xbf16, #tpu.memory_space<vmem>>, %arg6: memref<4x1xf32, #tpu.memory_space<vmem>>, %arg7: memref<1x1x10x152xbf16, #tpu.memory_space<vmem>>, %arg8: memref<1x1x10x152xbf16, #tpu.memory_space<vmem>>, %arg9: memref<1x4x128xf32, #tpu.memory_space<vmem>>) attributes {dimension_semantics = [#tpu.dimension_semantics<parallel>, #tpu.dimension_semantics<parallel>], iteration_bounds = array<i64: 2, 1>, scalar_prefetch = 0 : i64, scratch_operands = 0 : i64, tpu.core_type = #tpu.core_type<tc>, window_params = [{transform_indices = @transform_0, window_bounds = array<i64: 1>}, {pipeline_mode = #tpu.pipeline_mode<synchronous>, transform_indices = @transform_1, window_bounds = array<i64: 5, 8, 10>}, {pipeline_mode = #tpu.pipeline_mode<synchronous>, transform_indices = @transform_2, window_bounds = array<i64: 5, 8, 10>}, {pipeline_mode = #tpu.pipeline_mode<synchronous>, transform_indices = @transform_3, window_bounds = array<i64: 4, 8>}, {pipeline_mode = #tpu.pipeline_mode<synchronous>, transform_indices = @transform_4, window_bounds = array<i64: 4, 1>}, {transform_indices = @transform_5, window_bounds = array<i64: 1, 1, 10, 152>}, {transform_indices = @transform_6, window_bounds = array<i64: 1, 1, 10, 152>}, {transform_indices = @transform_7, window_bounds = array<i64: 1, 4, 128>}]} {
    %c0 = arith.constant 0 : index
    %0 = memref.load %arg2[%c0] : memref<1xf32, #tpu.memory_space<smem>>
    %c0_0 = arith.constant 0 : index
    %c0_1 = arith.constant 0 : index
    %c0_2 = arith.constant 0 : index
    %c0_3 = arith.constant 0 : index
    %1 = vector.load %arg7[%c0_0, %c0_1, %c0_2, %c0_3] : memref<1x1x10x152xbf16, #tpu.memory_space<vmem>>, vector<1x1x10x152xbf16>
    %2 = vector.shape_cast %1 : vector<1x1x10x152xbf16> to vector<10x152xbf16>
    %c0_4 = arith.constant 0 : index
    %c0_5 = arith.constant 0 : index
    %c0_6 = arith.constant 0 : index
    %c0_7 = arith.constant 0 : index
    %3 = vector.load %arg8[%c0_4, %c0_5, %c0_6, %c0_7] : memref<1x1x10x152xbf16, #tpu.memory_space<vmem>>, vector<1x1x10x152xbf16>
    %4 = vector.shape_cast %3 : vector<1x1x10x152xbf16> to vector<10x152xbf16>
    %c0_8 = arith.constant 0 : index
    %c0_9 = arith.constant 0 : index
    %c0_10 = arith.constant 0 : index
    %5 = vector.load %arg3[%c0_8, %c0_9, %c0_10] : memref<5x8x10xbf16, #tpu.memory_space<vmem>>, vector<5x8x10xbf16>
    %c0_11 = arith.constant 0 : index
    %c0_12 = arith.constant 0 : index
    %c0_13 = arith.constant 0 : index
    %6 = vector.load %arg4[%c0_11, %c0_12, %c0_13] : memref<5x8x10xbf16, #tpu.memory_space<vmem>>, vector<5x8x10xbf16>
    %cst = arith.constant 0.000000e+00 : f32
    %7 = vector.broadcast %cst : f32 to vector<8x128xf32>
    %8 = vector.extract_strided_slice %5 {offsets = [0, 0, 0], sizes = [1, 8, 10], strides = [1, 1, 1]} : vector<5x8x10xbf16> to vector<1x8x10xbf16>
    %9 = vector.shape_cast %8 : vector<1x8x10xbf16> to vector<8x10xbf16>
    %10 = vector.extract_strided_slice %2 {offsets = [0, 0], sizes = [10, 128], strides = [1, 1]} : vector<10x152xbf16> to vector<10x128xbf16>
    %cst_14 = arith.constant dense<0.000000e+00> : vector<8x128xf32>
    %11 = tpu.matmul %9, %10, %cst_14 {dimension_numbers = #tpu.dot_dimension_numbers<[1], [0], [0], [1], [0, 0, 1, 1], [], []>} : vector<8x10xbf16>, vector<10x128xbf16>, vector<8x128xf32> -> vector<8x128xf32>
    %12 = arith.addf %7, %11 : vector<8x128xf32>
    %13 = vector.extract_strided_slice %6 {offsets = [0, 0, 0], sizes = [1, 8, 10], strides = [1, 1, 1]} : vector<5x8x10xbf16> to vector<1x8x10xbf16>
    %14 = vector.shape_cast %13 : vector<1x8x10xbf16> to vector<8x10xbf16>
    %15 = vector.extract_strided_slice %4 {offsets = [0, 0], sizes = [10, 128], strides = [1, 1]} : vector<10x152xbf16> to vector<10x128xbf16>
    %cst_15 = arith.constant dense<0.000000e+00> : vector<8x128xf32>
    %16 = tpu.matmul %14, %15, %cst_15 {dimension_numbers = #tpu.dot_dimension_numbers<[1], [0], [0], [1], [0, 0, 1, 1], [], []>} : vector<8x10xbf16>, vector<10x128xbf16>, vector<8x128xf32> -> vector<8x128xf32>
    %17 = arith.addf %12, %16 : vector<8x128xf32>
    %18 = vector.extract_strided_slice %5 {offsets = [1, 0, 0], sizes = [1, 8, 10], strides = [1, 1, 1]} : vector<5x8x10xbf16> to vector<1x8x10xbf16>
    %19 = vector.shape_cast %18 : vector<1x8x10xbf16> to vector<8x10xbf16>
    %20 = vector.extract_strided_slice %2 {offsets = [0, 6], sizes = [10, 128], strides = [1, 1]} : vector<10x152xbf16> to vector<10x128xbf16>
    %cst_16 = arith.constant dense<0.000000e+00> : vector<8x128xf32>
    %21 = tpu.matmul %19, %20, %cst_16 {dimension_numbers = #tpu.dot_dimension_numbers<[1], [0], [0], [1], [0, 0, 1, 1], [], []>} : vector<8x10xbf16>, vector<10x128xbf16>, vector<8x128xf32> -> vector<8x128xf32>
    %22 = arith.addf %17, %21 : vector<8x128xf32>
    %23 = vector.extract_strided_slice %6 {offsets = [1, 0, 0], sizes = [1, 8, 10], strides = [1, 1, 1]} : vector<5x8x10xbf16> to vector<1x8x10xbf16>
    %24 = vector.shape_cast %23 : vector<1x8x10xbf16> to vector<8x10xbf16>
    %25 = vector.extract_strided_slice %4 {offsets = [0, 6], sizes = [10, 128], strides = [1, 1]} : vector<10x152xbf16> to vector<10x128xbf16>
    %cst_17 = arith.constant dense<0.000000e+00> : vector<8x128xf32>
    %26 = tpu.matmul %24, %25, %cst_17 {dimension_numbers = #tpu.dot_dimension_numbers<[1], [0], [0], [1], [0, 0, 1, 1], [], []>} : vector<8x10xbf16>, vector<10x128xbf16>, vector<8x128xf32> -> vector<8x128xf32>
    %27 = arith.addf %22, %26 : vector<8x128xf32>
    %28 = vector.extract_strided_slice %5 {offsets = [2, 0, 0], sizes = [1, 8, 10], strides = [1, 1, 1]} : vector<5x8x10xbf16> to vector<1x8x10xbf16>
    %29 = vector.shape_cast %28 : vector<1x8x10xbf16> to vector<8x10xbf16>
    %30 = vector.extract_strided_slice %2 {offsets = [0, 12], sizes = [10, 128], strides = [1, 1]} : vector<10x152xbf16> to vector<10x128xbf16>
    %cst_18 = arith.constant dense<0.000000e+00> : vector<8x128xf32>
    %31 = tpu.matmul %29, %30, %cst_18 {dimension_numbers = #tpu.dot_dimension_numbers<[1], [0], [0], [1], [0, 0, 1, 1], [], []>} : vector<8x10xbf16>, vector<10x128xbf16>, vector<8x128xf32> -> vector<8x128xf32>
    %32 = arith.addf %27, %31 : vector<8x128xf32>
    %33 = vector.extract_strided_slice %6 {offsets = [2, 0, 0], sizes = [1, 8, 10], strides = [1, 1, 1]} : vector<5x8x10xbf16> to vector<1x8x10xbf16>
    %34 = vector.shape_cast %33 : vector<1x8x10xbf16> to vector<8x10xbf16>
    %35 = vector.extract_strided_slice %4 {offsets = [0, 12], sizes = [10, 128], strides = [1, 1]} : vector<10x152xbf16> to vector<10x128xbf16>
    %cst_19 = arith.constant dense<0.000000e+00> : vector<8x128xf32>
    %36 = tpu.matmul %34, %35, %cst_19 {dimension_numbers = #tpu.dot_dimension_numbers<[1], [0], [0], [1], [0, 0, 1, 1], [], []>} : vector<8x10xbf16>, vector<10x128xbf16>, vector<8x128xf32> -> vector<8x128xf32>
    %37 = arith.addf %32, %36 : vector<8x128xf32>
    %38 = vector.extract_strided_slice %5 {offsets = [3, 0, 0], sizes = [1, 8, 10], strides = [1, 1, 1]} : vector<5x8x10xbf16> to vector<1x8x10xbf16>
    %39 = vector.shape_cast %38 : vector<1x8x10xbf16> to vector<8x10xbf16>
    %40 = vector.extract_strided_slice %2 {offsets = [0, 18], sizes = [10, 128], strides = [1, 1]} : vector<10x152xbf16> to vector<10x128xbf16>
    %cst_20 = arith.constant dense<0.000000e+00> : vector<8x128xf32>
    %41 = tpu.matmul %39, %40, %cst_20 {dimension_numbers = #tpu.dot_dimension_numbers<[1], [0], [0], [1], [0, 0, 1, 1], [], []>} : vector<8x10xbf16>, vector<10x128xbf16>, vector<8x128xf32> -> vector<8x128xf32>
    %42 = arith.addf %37, %41 : vector<8x128xf32>
    %43 = vector.extract_strided_slice %6 {offsets = [3, 0, 0], sizes = [1, 8, 10], strides = [1, 1, 1]} : vector<5x8x10xbf16> to vector<1x8x10xbf16>
    %44 = vector.shape_cast %43 : vector<1x8x10xbf16> to vector<8x10xbf16>
    %45 = vector.extract_strided_slice %4 {offsets = [0, 18], sizes = [10, 128], strides = [1, 1]} : vector<10x152xbf16> to vector<10x128xbf16>
    %cst_21 = arith.constant dense<0.000000e+00> : vector<8x128xf32>
    %46 = tpu.matmul %44, %45, %cst_21 {dimension_numbers = #tpu.dot_dimension_numbers<[1], [0], [0], [1], [0, 0, 1, 1], [], []>} : vector<8x10xbf16>, vector<10x128xbf16>, vector<8x128xf32> -> vector<8x128xf32>
    %47 = arith.addf %42, %46 : vector<8x128xf32>
    %48 = vector.extract_strided_slice %5 {offsets = [4, 0, 0], sizes = [1, 8, 10], strides = [1, 1, 1]} : vector<5x8x10xbf16> to vector<1x8x10xbf16>
    %49 = vector.shape_cast %48 : vector<1x8x10xbf16> to vector<8x10xbf16>
    %50 = vector.extract_strided_slice %2 {offsets = [0, 24], sizes = [10, 128], strides = [1, 1]} : vector<10x152xbf16> to vector<10x128xbf16>
    %cst_22 = arith.constant dense<0.000000e+00> : vector<8x128xf32>
    %51 = tpu.matmul %49, %50, %cst_22 {dimension_numbers = #tpu.dot_dimension_numbers<[1], [0], [0], [1], [0, 0, 1, 1], [], []>} : vector<8x10xbf16>, vector<10x128xbf16>, vector<8x128xf32> -> vector<8x128xf32>
    %52 = arith.addf %47, %51 : vector<8x128xf32>
    %53 = vector.extract_strided_slice %6 {offsets = [4, 0, 0], sizes = [1, 8, 10], strides = [1, 1, 1]} : vector<5x8x10xbf16> to vector<1x8x10xbf16>
    %54 = vector.shape_cast %53 : vector<1x8x10xbf16> to vector<8x10xbf16>
    %55 = vector.extract_strided_slice %4 {offsets = [0, 24], sizes = [10, 128], strides = [1, 1]} : vector<10x152xbf16> to vector<10x128xbf16>
    %cst_23 = arith.constant dense<0.000000e+00> : vector<8x128xf32>
    %56 = tpu.matmul %54, %55, %cst_23 {dimension_numbers = #tpu.dot_dimension_numbers<[1], [0], [0], [1], [0, 0, 1, 1], [], []>} : vector<8x10xbf16>, vector<10x128xbf16>, vector<8x128xf32> -> vector<8x128xf32>
    %57 = arith.addf %52, %56 : vector<8x128xf32>
    %cst_24 = arith.constant 0.000000e+00 : f32
    %58 = vector.broadcast %cst_24 : f32 to vector<8x128xf32>
    %59 = arith.cmpf ogt, %57, %58 : vector<8x128xf32>
    %60 = vector.broadcast %0 : f32 to vector<8x128xf32>
    %61 = arith.mulf %60, %57 : vector<8x128xf32>
    %62 = arith.select %59, %57, %61 : vector<8x128xi1>, vector<8x128xf32>
    %c0_25 = arith.constant 0 : index
    %c0_26 = arith.constant 0 : index
    %63 = vector.load %arg5[%c0_25, %c0_26] : memref<4x8xbf16, #tpu.memory_space<vmem>>, vector<4x8xbf16>
    %64 = arith.truncf %62 : vector<8x128xf32> to vector<8x128xbf16>
    %cst_27 = arith.constant dense<0.000000e+00> : vector<4x128xf32>
    %65 = tpu.matmul %63, %64, %cst_27 {dimension_numbers = #tpu.dot_dimension_numbers<[1], [0], [0], [1], [0, 0, 1, 1], [], []>} : vector<4x8xbf16>, vector<8x128xbf16>, vector<4x128xf32> -> vector<4x128xf32>
    %c0_28 = arith.constant 0 : index
    %c0_29 = arith.constant 0 : index
    %66 = vector.load %arg6[%c0_28, %c0_29] : memref<4x1xf32, #tpu.memory_space<vmem>>, vector<4x1xf32>
    %67 = vector.broadcast %66 : vector<4x1xf32> to vector<4x128xf32>
    %68 = arith.addf %65, %67 : vector<4x128xf32>
    %cst_30 = arith.constant 0.000000e+00 : f32
    %69 = vector.broadcast %cst_30 : f32 to vector<4x128xf32>
    %70 = arith.maximumf %68, %69 : vector<4x128xf32>
    %c0_31 = arith.constant 0 : index
    %c0_32 = arith.constant 0 : index
    %c0_33 = arith.constant 0 : index
    %71 = vector.load %arg9[%c0_31, %c0_32, %c0_33] : memref<1x4x128xf32, #tpu.memory_space<vmem>>, vector<1x4x128xf32>
    %72 = vector.shape_cast %71 : vector<1x4x128xf32> to vector<4x128xf32>
    %73 = vector.shape_cast %70 : vector<4x128xf32> to vector<1x4x128xf32>
    tpu.vector_store %arg9[%c0_31, %c0_32, %c0_33], %73 {strides = array<i32>} : memref<1x4x128xf32, #tpu.memory_space<vmem>>, vector<1x4x128xf32>,
    return
  }
  func.func @transform_0(%arg0: i32, %arg1: i32) -> i32 {
    %c0_i32 = arith.constant 0 : i32
    %c0_i32_0 = arith.constant 0 : i32
    return %c0_i32 : i32
  }
  func.func @transform_1(%arg0: i32, %arg1: i32) -> (i32, i32, i32) {
    %c0_i32 = arith.constant 0 : i32
    %c0_i32_0 = arith.constant 0 : i32
    %c0_i32_1 = arith.constant 0 : i32
    %c0_i32_2 = arith.constant 0 : i32
    return %c0_i32, %c0_i32_0, %c0_i32_1 : i32, i32, i32
  }
  func.func @transform_2(%arg0: i32, %arg1: i32) -> (i32, i32, i32) {
    %c0_i32 = arith.constant 0 : i32
    %c0_i32_0 = arith.constant 0 : i32
    %c0_i32_1 = arith.constant 0 : i32
    %c0_i32_2 = arith.constant 0 : i32
    return %c0_i32, %c0_i32_0, %c0_i32_1 : i32, i32, i32
  }
  func.func @transform_3(%arg0: i32, %arg1: i32) -> (i32, i32) {
    %c0_i32 = arith.constant 0 : i32
    %c0_i32_0 = arith.constant 0 : i32
    %c0_i32_1 = arith.constant 0 : i32
    return %c0_i32, %c0_i32_0 : i32, i32
  }
  func.func @transform_4(%arg0: i32, %arg1: i32) -> (i32, i32) {
    %c0_i32 = arith.constant 0 : i32
    %c0_i32_0 = arith.constant 0 : i32
    %c0_i32_1 = arith.constant 0 : i32
    return %c0_i32, %c0_i32_0 : i32, i32
  }
  func.func @transform_5(%arg0: i32, %arg1: i32) -> (i32, i32, i32, i32) {
    %c0_i32 = arith.constant 0 : i32
    %c0_i32_0 = arith.constant 0 : i32
    %c0_i32_1 = arith.constant 0 : i32
    return %arg0, %arg1, %c0_i32, %c0_i32_0 : i32, i32, i32, i32
  }
  func.func @transform_6(%arg0: i32, %arg1: i32) -> (i32, i32, i32, i32) {
    %c0_i32 = arith.constant 0 : i32
    %c0_i32_0 = arith.constant 0 : i32
    %c0_i32_1 = arith.constant 0 : i32
    return %arg0, %arg1, %c0_i32, %c0_i32_0 : i32, i32, i32, i32
  }
  func.func @transform_7(%arg0: i32, %arg1: i32) -> (i32, i32, i32) {
    %c0_i32 = arith.constant 0 : i32
    %c0_i32_0 = arith.constant 0 : i32
    return %arg0, %c0_i32, %arg1 : i32, i32, i32
  }
}

</mosaic_0001>

<llo_original>
// kernel: dprnn_me_forward.1
$region0: #{dprnn_me_forward.1}
  #allocation0 [shape = 'u32[]', space=smem, size = 0x4, offset = 0x4, fixed_abs, tag = 'smem constant byte address 0x4 - core index']
  #allocation1 [shape = 'u32[144,128]{1,0:T(1,128)}', space=vmem, size = 0x12000, scoped, tag = 'internal scratch']
  #allocation2 [shape = 'f32[1]{0:T(128)S(6)}', space=smem, size = 0x200, scoped, tag = 'scoped memory for dprnn_me_forward.1']
  %s0 = inlined_call_operand.<no memory space> [shape: f32[1], index: 0, kind: input, shape index: {}]
  %s1 = inlined_call_operand.vmem [shape: bf16[5,8,10], index: 1, kind: input, shape index: {}]
  %s2 = inlined_call_operand.vmem [shape: bf16[5,8,10], index: 2, kind: input, shape index: {}]
  %s3 = inlined_call_operand.vmem [shape: bf16[4,8], index: 3, kind: input, shape index: {}]
  %s4 = inlined_call_operand.vmem [shape: f32[4,1], index: 4, kind: input, shape index: {}]
  %s5 = inlined_call_operand.vmem [shape: bf16[2,1,10,152], index: 5, kind: input, shape index: {}]
  %s6 = inlined_call_operand.vmem [shape: bf16[2,1,10,152], index: 6, kind: input, shape index: {}]
  %s7 = inlined_call_operand.vmem [shape: f32[2,4,128], index: 7, kind: output, shape index: {}]
  %s8 = sld [smem:[#allocation0]]
  $region61: #{dprnn_me_forward.1} parent=0
    _
  %s10 = ssub.s32 1, %s8
  %s11 = scalar_select 0, %s10, %s8
  %12 = sst [smem:[#allocation2]] %s0
  loop: start=0, step=1, limit=4
  $region2: #{dprnn_me_forward.1} parent=0 // loop_pre_header
    _
  $region3: #{dprnn_me_forward.1} parent=0 // loop_header
    %s14 = sphi 0, %s18
    %p15 = scmp.ge.s32.totalorder %s14, 4
    %s21 = sphi 0, %s33
    %s22 = sphi 0, %s29
    %s23 = sphi 0, %s21
    %s24 = sphi 0, %s22
    %s25 = sphi 0, %s23
    %s26 = sphi 0, %s24
    %s34 = sphi 0, %s34
    %s36 = sphi 0, %s34
    %s37 = sphi 0, %s36
    %s51 = sphi 0, %s37
    %s55 = sphi 0, %s55
    %s57 = sphi 0, %s55
    %s58 = sphi 0, %s57
    %s72 = sphi 0, %s58
    %s76 = sphi 0, %s76
    %s78 = sphi 0, %s76
    %s79 = sphi 0, %s78
    %s93 = sphi 0, %s79
    %s97 = sphi 0, %s97
    %s99 = sphi 0, %s97
    %s100 = sphi 0, %s99
    %s114 = sphi 0, %s100
    %s118 = sphi 0, %s118
    %s120 = sphi 0, %s118
    %s121 = sphi 0, %s120
    %s135 = sphi 0, %s121
    %s143 = sphi 0, %s145
    %s146 = sphi 0, %s143
    %s147 = sphi 0, %s146
    %s163 = sphi 0, %s147
    %s171 = sphi 0, %s173
    %s174 = sphi 0, %s171
    %s175 = sphi 0, %s174
    %s191 = sphi 0, %s175
    %s199 = sphi 0, %s201
    %s202 = sphi 0, %s199
    %s203 = sphi 0, %s202
    %s219 = sphi 0, %s203
  $region4: #{dprnn_me_forward.1} parent=0 // loop_header_branch
    %17 = sbr.rel (%p15) target = $region8
  $region5: #{dprnn_me_forward.1} parent=0 // loop_body
    %s19 = ssub.s32 %s14, 1
    %s20 = ssub.s32 %s14, 2
    %s27 = sadd.s32 1, %s22
    %p28 = scmp.ge.s32.totalorder %s27, 1
    %s29 = scalar_select %p28, 0, %s27
    %s30 = sadd.s32 1, %s21
    %s31 = scalar_select %p28, %s30, %s21
    %p32 = scmp.ge.s32.totalorder %s31, 2
    %s33 = scalar_select %p32, 0, %s31
    %s35 = sadd.s32 %s34, 1
    %p38 = scmp.eq.s32.totalorder %s14, 1
    %p39 = scmp.ne.s32.totalorder %s34, %s36
    %p40 = scmp.eq.s32.totalorder %s14, 0
    %p41 = por %p39, %p40
    %p42 = scmp.ne.s32.totalorder %s34, %s36
    %p43 = scmp.eq.s32.totalorder %s19, 1
    %p44 = por %p42, %p43
    %p45 = scmp.ne.s32.totalorder %s36, %s37
    %p46 = scmp.eq.s32.totalorder %s19, 0
    %p47 = por %p45, %p46
    %p48 = scmp.ne.s32.totalorder %s36, %s37
    %p49 = scmp.eq.s32.totalorder %s20, 1
    %p50 = por %p48, %p49
    %p52 = scmp.ne.s32.totalorder %s37, %s51
    %p53 = scmp.eq.s32.totalorder %s20, 0
    %p54 = por %p52, %p53
    %s56 = sadd.s32 %s55, 1
    %p59 = scmp.eq.s32.totalorder %s14, 1
    %p60 = scmp.ne.s32.totalorder %s55, %s57
    %p61 = scmp.eq.s32.totalorder %s14, 0
    %p62 = por %p60, %p61
    %p63 = scmp.ne.s32.totalorder %s55, %s57
    %p64 = scmp.eq.s32.totalorder %s19, 1
    %p65 = por %p63, %p64
    %p66 = scmp.ne.s32.totalorder %s57, %s58
    %p67 = scmp.eq.s32.totalorder %s19, 0
    %p68 = por %p66, %p67
    %p69 = scmp.ne.s32.totalorder %s57, %s58
    %p70 = scmp.eq.s32.totalorder %s20, 1
    %p71 = por %p69, %p70
    %p73 = scmp.ne.s32.totalorder %s58, %s72
    %p74 = scmp.eq.s32.totalorder %s20, 0
    %p75 = por %p73, %p74
    %s77 = sadd.s32 %s76, 1
    %p80 = scmp.eq.s32.totalorder %s14, 1
    %p81 = scmp.ne.s32.totalorder %s76, %s78
    %p82 = scmp.eq.s32.totalorder %s14, 0
    %p83 = por %p81, %p82
    %p84 = scmp.ne.s32.totalorder %s76, %s78
    %p85 = scmp.eq.s32.totalorder %s19, 1
    %p86 = por %p84, %p85
    %p87 = scmp.ne.s32.totalorder %s78, %s79
    %p88 = scmp.eq.s32.totalorder %s19, 0
    %p89 = por %p87, %p88
    %p90 = scmp.ne.s32.totalorder %s78, %s79
    %p91 = scmp.eq.s32.totalorder %s20, 1
    %p92 = por %p90, %p91
    %p94 = scmp.ne.s32.totalorder %s79, %s93
    %p95 = scmp.eq.s32.totalorder %s20, 0
    %p96 = por %p94, %p95
    %s98 = sadd.s32 %s97, 1
    %p101 = scmp.eq.s32.totalorder %s14, 1
    %p102 = scmp.ne.s32.totalorder %s97, %s99
    %p103 = scmp.eq.s32.totalorder %s14, 0
    %p104 = por %p102, %p103
    %p105 = scmp.ne.s32.totalorder %s97, %s99
    %p106 = scmp.eq.s32.totalorder %s19, 1
    %p107 = por %p105, %p106
    %p108 = scmp.ne.s32.totalorder %s99, %s100
    %p109 = scmp.eq.s32.totalorder %s19, 0
    %p110 = por %p108, %p109
    %p111 = scmp.ne.s32.totalorder %s99, %s100
    %p112 = scmp.eq.s32.totalorder %s20, 1
    %p113 = por %p111, %p112
    %p115 = scmp.ne.s32.totalorder %s100, %s114
    %p116 = scmp.eq.s32.totalorder %s20, 0
    %p117 = por %p115, %p116
    %s119 = sadd.s32 %s118, 1
    %p122 = scmp.eq.s32.totalorder %s14, 1
    %p123 = scmp.ne.s32.totalorder %s118, %s120
    %p124 = scmp.eq.s32.totalorder %s14, 0
    %p125 = por %p123, %p124
    %p126 = scmp.ne.s32.totalorder %s118, %s120
    %p127 = scmp.eq.s32.totalorder %s19, 1
    %p128 = por %p126, %p127
    %p129 = scmp.ne.s32.totalorder %s120, %s121
    %p130 = scmp.eq.s32.totalorder %s19, 0
    %p131 = por %p129, %p130
    %p132 = scmp.ne.s32.totalorder %s120, %s121
    %p133 = scmp.eq.s32.totalorder %s20, 1
    %p134 = por %p132, %p133
    %p136 = scmp.ne.s32.totalorder %s121, %s135
    %p137 = scmp.eq.s32.totalorder %s20, 0
    %p138 = por %p136, %p137
    %s139 = ssub.s32 %s21, %s33
    %s140 = ssub.s32 %s22, %s29
    %s141 = sor.u32 %s139, %s140
    %p142 = scmp.eq.s32.totalorder %s141, 0
    %s144 = sadd.s32 %s143, 1
    %s145 = scalar_select %p142, %s143, %s144
    %p148 = pneg %p142
    %p149 = scmp.eq.s32.totalorder %s14, 1
    %p150 = por %p148, %p149
    %p151 = scmp.ne.s32.totalorder %s143, %s146
    %p152 = scmp.eq.s32.totalorder %s14, 0
    %p153 = por %p151, %p152
    %p154 = scmp.ne.s32.totalorder %s143, %s146
    %p155 = scmp.eq.s32.totalorder %s19, 1
    %p156 = por %p154, %p155
    %p157 = scmp.ne.s32.totalorder %s146, %s147
    %p158 = scmp.eq.s32.totalorder %s19, 0
    %p159 = por %p157, %p158
    %p160 = scmp.ne.s32.totalorder %s146, %s147
    %p161 = scmp.eq.s32.totalorder %s20, 1
    %p162 = por %p160, %p161
    %p164 = scmp.ne.s32.totalorder %s147, %s163
    %p165 = scmp.eq.s32.totalorder %s20, 0
    %p166 = por %p164, %p165
    %s167 = ssub.s32 %s21, %s33
    %s168 = ssub.s32 %s22, %s29
    %s169 = sor.u32 %s167, %s168
    %p170 = scmp.eq.s32.totalorder %s169, 0
    %s172 = sadd.s32 %s171, 1
    %s173 = scalar_select %p170, %s171, %s172
    %p176 = pneg %p170
    %p177 = scmp.eq.s32.totalorder %s14, 1
    %p178 = por %p176, %p177
    %p179 = scmp.ne.s32.totalorder %s171, %s174
    %p180 = scmp.eq.s32.totalorder %s14, 0
    %p181 = por %p179, %p180
    %p182 = scmp.ne.s32.totalorder %s171, %s174
    %p183 = scmp.eq.s32.totalorder %s19, 1
    %p184 = por %p182, %p183
    %p185 = scmp.ne.s32.totalorder %s174, %s175
    %p186 = scmp.eq.s32.totalorder %s19, 0
    %p187 = por %p185, %p186
    %p188 = scmp.ne.s32.totalorder %s174, %s175
    %p189 = scmp.eq.s32.totalorder %s20, 1
    %p190 = por %p188, %p189
    %p192 = scmp.ne.s32.totalorder %s175, %s191
    %p193 = scmp.eq.s32.totalorder %s20, 0
    %p194 = por %p192, %p193
    %s195 = ssub.s32 %s21, %s33
    %s196 = ssub.s32 %s22, %s29
    %s197 = sor.u32 %s195, %s196
    %p198 = scmp.eq.s32.totalorder %s197, 0
    %s200 = sadd.s32 %s199, 1
    %s201 = scalar_select %p198, %s199, %s200
    %p204 = pneg %p198
    %p205 = scmp.eq.s32.totalorder %s14, 1
    %p206 = por %p204, %p205
    %p207 = scmp.ne.s32.totalorder %s199, %s202
    %p208 = scmp.eq.s32.totalorder %s14, 0
    %p209 = por %p207, %p208
    %p210 = scmp.ne.s32.totalorder %s199, %s202
    %p211 = scmp.eq.s32.totalorder %s19, 1
    %p212 = por %p210, %p211
    %p213 = scmp.ne.s32.totalorder %s202, %s203
    %p214 = scmp.eq.s32.totalorder %s19, 0
    %p215 = por %p213, %p214
    %p216 = scmp.ne.s32.totalorder %s202, %s203
    %p217 = scmp.eq.s32.totalorder %s20, 1
    %p218 = por %p216, %p217
    %p220 = scmp.ne.s32.totalorder %s203, %s219
    %p221 = scmp.eq.s32.totalorder %s20, 0
    %p222 = por %p220, %p221
    %p223 = scmp.le.s32.totalorder 1, %s14
    %p224 = scmp.lt.s32.totalorder %s14, 3
    %p225 = pnand %p223, %p224
    %p226 = pneg %p225
    // Predicated region
    $region9: #{dprnn_me_forward.1} parent=5 // pred_check
      _
    $region10: #{dprnn_me_forward.1} parent=5 // pred_check_branch
      %228 = sbr.rel (%p225) target = $region12
    $region11: #{dprnn_me_forward.1} parent=5 // pred_region
      %s229 = ssub.s32 %s14, 1
      // Predicated region
      $region13: #{dprnn_me_forward.1} parent=11 // pred_check
        %p230 = pneg %p47
      $region14: #{dprnn_me_forward.1} parent=11 // pred_check_branch
        %232 = sbr.rel (%p230) target = $region16
      $region15: #{dprnn_me_forward.1} parent=11 // pred_region
        _
      $region16: #{dprnn_me_forward.1} parent=11 // pred_fallthru
        _
      // Predicated region
      $region17: #{dprnn_me_forward.1} parent=11 // pred_check
        %p233 = pneg %p68
      $region18: #{dprnn_me_forward.1} parent=11 // pred_check_branch
        %235 = sbr.rel (%p233) target = $region20
      $region19: #{dprnn_me_forward.1} parent=11 // pred_region
        _
      $region20: #{dprnn_me_forward.1} parent=11 // pred_fallthru
        _
      // Predicated region
      $region21: #{dprnn_me_forward.1} parent=11 // pred_check
        %p236 = pneg %p89
      $region22: #{dprnn_me_forward.1} parent=11 // pred_check_branch
        %238 = sbr.rel (%p236) target = $region24
      $region23: #{dprnn_me_forward.1} parent=11 // pred_region
        _
      $region24: #{dprnn_me_forward.1} parent=11 // pred_fallthru
        _
      // Predicated region
      $region25: #{dprnn_me_forward.1} parent=11 // pred_check
        %p239 = pneg %p110
      $region26: #{dprnn_me_forward.1} parent=11 // pred_check_branch
        %241 = sbr.rel (%p239) target = $region28
      $region27: #{dprnn_me_forward.1} parent=11 // pred_region
        _
      $region28: #{dprnn_me_forward.1} parent=11 // pred_fallthru
        _
      // Predicated region
      $region29: #{dprnn_me_forward.1} parent=11 // pred_check
        %p242 = pneg %p131
      $region30: #{dprnn_me_forward.1} parent=11 // pred_check_branch
        %244 = sbr.rel (%p242) target = $region32
      $region31: #{dprnn_me_forward.1} parent=11 // pred_region
        _
      $region32: #{dprnn_me_forward.1} parent=11 // pred_fallthru
        _
    $region12: #{dprnn_me_forward.1} parent=5 // pred_fallthru
      _
    %p245 = scmp.lt.s32.totalorder %s14, 2
    // Predicated region
    $region33: #{dprnn_me_forward.1} parent=5 // pred_check
      %p246 = pneg %p245
    $region34: #{dprnn_me_forward.1} parent=5 // pred_check_branch
      %248 = sbr.rel (%p246) target = $region36
    $region35: #{dprnn_me_forward.1} parent=5 // pred_region
      // Predicated region
      $region37: #{dprnn_me_forward.1} parent=35 // pred_check
        %p249 = pneg %p153
      $region38: #{dprnn_me_forward.1} parent=35 // pred_check_branch
        %251 = sbr.rel (%p249) target = $region40
      $region39: #{dprnn_me_forward.1} parent=35 // pred_region
        %p252 = scmp.lt.s32.totalorder %s21, 1
        %s253 = scalar_select %p252, %s21, 1
        %p254 = scmp.lt.s32.totalorder %s22, 0
        %s255 = scalar_select %p254, %s22, 0
        %s256 = smul.addr %s255, 4
        %s257 = smul.addr %s253, 4
        %s258 = sadd.s32 %s256, %s257
        %s259 = smul.addr %s258, 4
        %s260 = scalar_lea.vmem %s5, %s259
      $region40: #{dprnn_me_forward.1} parent=35 // pred_fallthru
        _
      // Predicated region
      $region41: #{dprnn_me_forward.1} parent=35 // pred_check
        %p261 = pneg %p181
      $region42: #{dprnn_me_forward.1} parent=35 // pred_check_branch
        %263 = sbr.rel (%p261) target = $region44
      $region43: #{dprnn_me_forward.1} parent=35 // pred_region
        %p264 = scmp.lt.s32.totalorder %s21, 1
        %s265 = scalar_select %p264, %s21, 1
        %p266 = scmp.lt.s32.totalorder %s22, 0
        %s267 = scalar_select %p266, %s22, 0
        %s268 = smul.addr %s267, 4
        %s269 = smul.addr %s265, 4
        %s270 = sadd.s32 %s268, %s269
        %s271 = smul.addr %s270, 4
        %s272 = scalar_lea.vmem %s6, %s271
      $region44: #{dprnn_me_forward.1} parent=35 // pred_fallthru
        _
    $region36: #{dprnn_me_forward.1} parent=5 // pred_fallthru
      _
    %p273 = scmp.le.s32.totalorder 1, %s14
    %p274 = scmp.lt.s32.totalorder %s14, 3
    %p275 = pnand %p273, %p274
    %p276 = pneg %p275
    // Predicated region
    $region45: #{dprnn_me_forward.1} parent=5 // pred_check
      _
    $region46: #{dprnn_me_forward.1} parent=5 // pred_check_branch
      %278 = sbr.rel (%p275) target = $region48
    $region47: #{dprnn_me_forward.1} parent=5 // pred_region
      %s279 = ssub.s32 %s14, 1
      %p280 = pneg %p47
      %p281 = pneg %p44
      %p282 = pneg %p68
      %p283 = pneg %p65
      %p284 = pneg %p89
      %p285 = pneg %p86
      %p286 = pneg %p110
      %p287 = pneg %p107
      %p288 = pneg %p131
      %p289 = pneg %p128
      %p290 = scmp.lt.s32.totalorder %s23, 1
      %s291 = scalar_select %p290, %s23, 1
      %p292 = scmp.lt.s32.totalorder %s24, 0
      %s293 = scalar_select %p292, %s24, 0
      %s294 = smul.addr %s293, 4
      %s295 = smul.addr %s291, 4
      %s296 = sadd.s32 %s294, %s295
      %s297 = smul.addr %s296, 4
      %s298 = scalar_lea.vmem %s5, %s297
      %p299 = pneg %p159
      %p300 = pneg %p156
      %p301 = scmp.lt.s32.totalorder %s23, 1
      %s302 = scalar_select %p301, %s23, 1
      %p303 = scmp.lt.s32.totalorder %s24, 0
      %s304 = scalar_select %p303, %s24, 0
      %s305 = smul.addr %s304, 4
      %s306 = smul.addr %s302, 4
      %s307 = sadd.s32 %s305, %s306
      %s308 = smul.addr %s307, 4
      %s309 = scalar_lea.vmem %s6, %s308
      %p310 = pneg %p187
      %p311 = pneg %p184
      %p312 = pneg %p215
      %p313 = pneg %p212
      %p314 = scmp.lt.s32.totalorder %s23, 1
      %s315 = scalar_select %p314, %s23, 1
      %p316 = scmp.lt.s32.totalorder %s24, 0
      %s317 = scalar_select %p316, %s24, 0
      %s318 = sadd.s32 %s317, %s315
      %s319 = smul.addr %s318, 4
      %s320 = scalar_lea.vmem %s7, %s319
      %p321 = scmp.lt.s32.totalorder %s23, 1
      %s322 = scalar_select %p321, %s23, 1
      %p323 = scmp.lt.s32.totalorder %s24, 0
      %s324 = scalar_select %p323, %s24, 0
      %s325 = smul.addr %s324, 4
      %s326 = smul.addr %s322, 4
      %s327 = sadd.s32 %s325, %s326
      %s328 = smul.addr %s327, 4
      %s329 = scalar_lea.vmem %s5, %s328
      %p330 = scmp.lt.s32.totalorder %s23, 1
      %s331 = scalar_select %p330, %s23, 1
      %p332 = scmp.lt.s32.totalorder %s24, 0
      %s333 = scalar_select %p332, %s24, 0
      %s334 = smul.addr %s333, 4
      %s335 = smul.addr %s331, 4
      %s336 = sadd.s32 %s334, %s335
      %s337 = smul.addr %s336, 4
      %s338 = scalar_lea.vmem %s6, %s337
      %p339 = scmp.lt.s32.totalorder %s23, 1
      %s340 = scalar_select %p339, %s23, 1
      %p341 = scmp.lt.s32.totalorder %s24, 0
      %s342 = scalar_select %p341, %s24, 0
      %s343 = sadd.s32 %s342, %s340
      %s344 = smul.addr %s343, 4
      %s345 = scalar_lea.vmem %s7, %s344
      %s347 = sld [smem:[#allocation2]]
      %v348 = vld [vmem:[%s329] sm:$0xff]
      %v349 = vld [vmem:[%s329 + $0x8] sm:$0x11]
      %v350 = vld [vmem:[%s338] sm:$0xff]
      %v351 = vld [vmem:[%s338 + $0x8] sm:$0x11]
      %v352 = vld [vmem:[%s1] sm:$0xf]
      %v353 = vld [vmem:[%s1 + $0x4] sm:$0xf]
      %v354 = vld [vmem:[%s1 + $0x8] sm:$0xf]
      %v355 = vld [vmem:[%s1 + $0xc] sm:$0xf]
      %v356 = vld [vmem:[%s1 + $0x10] sm:$0xf]
      %v357 = vld [vmem:[%s2] sm:$0xf]
      %v358 = vld [vmem:[%s2 + $0x4] sm:$0xf]
      %v359 = vld [vmem:[%s2 + $0x8] sm:$0xf]
      %v360 = vld [vmem:[%s2 + $0xc] sm:$0xf]
      %v361 = vld [vmem:[%s2 + $0x10] sm:$0xf]
      %v364 = vunpack.c.l.b16 %v350
      %v365 = vunpack.c.l.b16 %v351
      %v366 = vpack.c.b16 %v365, %v364
      %vm367 = vcmask 80896
      %v369 = vsel %vm367, %v357, 0
      %vm371 = vcmask 1044480
      %v373 = vsel %vm371, %v366, 0
      %375 = vmatprep.subr.bf16.mxu0 0
      %376 = vmatpush1.bf16.msra.mxu0 0
      %377 = vmatprep.subr.bf16.mxu0 0
      %378 = vmatpush1.bf16.msra.mxu0 0
      %379 = vmatprep.subr.bf16.mxu0 0
      %380 = vmatpush1.bf16.msra.mxu0 0
      %381 = vmatprep.subr.bf16.mxu0 0
      %382 = vmatpush1.bf16.msra.mxu0 0
      %383 = vmatprep.subr.bf16.mxu0 0
      %384 = vmatpush1.bf16.msra.mxu0 0
      %385 = vmatprep.subr.bf16.mxu0 0
      %386 = vmatpush1.bf16.msra.mxu0 0
      %387 = vmatprep.subr.bf16.mxu0 0
      %388 = vmatpush1.bf16.msra.mxu0 0
      %389 = vmatprep.subr.bf16.mxu0 0
      %390 = vmatpush1.bf16.msra.mxu0 %v373
      %391 = vmatprep.subr.bf16.mxu0 0
      %392 = vmatpush2.bf16.msra.mxu0 0
      %393 = vmatprep.subr.bf16.mxu0 0
      %394 = vmatpush2.bf16.msra.mxu0 0
      %395 = vmatprep.subr.bf16.mxu0 0
      %396 = vmatpush2.bf16.msra.mxu0 0
      %397 = vmatprep.subr.bf16.mxu0 0
      %398 = vmatpush2.bf16.msra.mxu0 0
      %399 = vmatprep.subr.bf16.mxu0 0
      %400 = vmatpush2.bf16.msra.mxu0 0
      %401 = vmatprep.subr.bf16.mxu0 0
      %402 = vmatpush2.bf16.msra.mxu0 0
      %403 = vmatprep.subr.bf16.mxu0 0
      %404 = vmatpush2.bf16.msra.mxu0 0
      %405 = vmatprep.subr.bf16.mxu0 0
      %406 = vmatpush2.bf16.msra.mxu0 0
      %407 = vmatprep.mubr.bf16.mxu0 0
      %408 = vmatmul.mubr.bf16.gmra.mxu0 %v369
      %v409 = vpop.f32.mrf.mxu0
      %v410 = vadd.f32 0.0, %v409
      %v411 = vpop.f32.mrf.mxu0
      %v412 = vpop.f32.mrf.mxu0
      %v413 = vpop.f32.mrf.mxu0
      %414 = vdwg.mxu0
      %v417 = vunpack.c.l.b16 %v348
      %v418 = vunpack.c.l.b16 %v349
      %v419 = vpack.c.b16 %v418, %v417
      %v421 = vsel %vm367, %v352, 0
      %v424 = vsel %vm371, %v419, 0
      %426 = vmatprep.subr.bf16.mxu0 0
      %427 = vmatpush1.bf16.msra.mxu0 0
      %428 = vmatprep.subr.bf16.mxu0 0
      %429 = vmatpush1.bf16.msra.mxu0 0
      %430 = vmatprep.subr.bf16.mxu0 0
      %431 = vmatpush1.bf16.msra.mxu0 0
      %432 = vmatprep.subr.bf16.mxu0 0
      %433 = vmatpush1.bf16.msra.mxu0 0
      %434 = vmatprep.subr.bf16.mxu0 0
      %435 = vmatpush1.bf16.msra.mxu0 0
      %436 = vmatprep.subr.bf16.mxu0 0
      %437 = vmatpush1.bf16.msra.mxu0 0
      %438 = vmatprep.subr.bf16.mxu0 0
      %439 = vmatpush1.bf16.msra.mxu0 0
      %440 = vmatprep.subr.bf16.mxu0 0
      %441 = vmatpush1.bf16.msra.mxu0 %v424
      %442 = vmatprep.subr.bf16.mxu0 0
      %443 = vmatpush2.bf16.msra.mxu0 0
      %444 = vmatprep.subr.bf16.mxu0 0
      %445 = vmatpush2.bf16.msra.mxu0 0
      %446 = vmatprep.subr.bf16.mxu0 0
      %447 = vmatpush2.bf16.msra.mxu0 0
      %448 = vmatprep.subr.bf16.mxu0 0
      %449 = vmatpush2.bf16.msra.mxu0 0
      %450 = vmatprep.subr.bf16.mxu0 0
      %451 = vmatpush2.bf16.msra.mxu0 0
      %452 = vmatprep.subr.bf16.mxu0 0
      %453 = vmatpush2.bf16.msra.mxu0 0
      %454 = vmatprep.subr.bf16.mxu0 0
      %455 = vmatpush2.bf16.msra.mxu0 0
      %456 = vmatprep.subr.bf16.mxu0 0
      %457 = vmatpush2.bf16.msra.mxu0 0
      %458 = vmatprep.mubr.bf16.mxu0 0
      %459 = vmatmul.mubr.bf16.gmra.mxu0 %v421
      %v460 = vpop.f32.mrf.mxu0
      %v461 = vadd.f32 %v410, %v460
      %v462 = vpop.f32.mrf.mxu0
      %v463 = vpop.f32.mrf.mxu0
      %v464 = vpop.f32.mrf.mxu0
      %465 = vdwg.mxu0
      %v466 = vunpack.c.h.b16 %v348
      %v467 = vunpack.c.h.b16 %v349
      %v468 = vpack.c.b16 %v467, %v466
      %469 = vrot.lane.b32.xlu0 %v419, 122
      %v470 = vpop.permute.xlu0 %469
      %471 = vrot.lane.b32.xlu0 %v468, 122
      %v472 = vpop.permute.xlu0 %471
      %vm473 = vcmask 998400
      %v474 = vsel %vm473, %v470, %v472
      %v476 = vsel %vm367, %v353, 0
      %v479 = vsel %vm371, %v474, 0
      %481 = vmatprep.subr.bf16.mxu0 0
      %482 = vmatpush1.bf16.msra.mxu0 0
      %483 = vmatprep.subr.bf16.mxu0 0
      %484 = vmatpush1.bf16.msra.mxu0 0
      %485 = vmatprep.subr.bf16.mxu0 0
      %486 = vmatpush1.bf16.msra.mxu0 0
      %487 = vmatprep.subr.bf16.mxu0 0
      %488 = vmatpush1.bf16.msra.mxu0 0
      %489 = vmatprep.subr.bf16.mxu0 0
      %490 = vmatpush1.bf16.msra.mxu0 0
      %491 = vmatprep.subr.bf16.mxu0 0
      %492 = vmatpush1.bf16.msra.mxu0 0
      %493 = vmatprep.subr.bf16.mxu0 0
      %494 = vmatpush1.bf16.msra.mxu0 0
      %495 = vmatprep.subr.bf16.mxu0 0
      %496 = vmatpush1.bf16.msra.mxu0 %v479
      %497 = vmatprep.subr.bf16.mxu0 0
      %498 = vmatpush2.bf16.msra.mxu0 0
      %499 = vmatprep.subr.bf16.mxu0 0
      %500 = vmatpush2.bf16.msra.mxu0 0
      %501 = vmatprep.subr.bf16.mxu0 0
      %502 = vmatpush2.bf16.msra.mxu0 0
      %503 = vmatprep.subr.bf16.mxu0 0
      %504 = vmatpush2.bf16.msra.mxu0 0
      %505 = vmatprep.subr.bf16.mxu0 0
      %506 = vmatpush2.bf16.msra.mxu0 0
      %507 = vmatprep.subr.bf16.mxu0 0
      %508 = vmatpush2.bf16.msra.mxu0 0
      %509 = vmatprep.subr.bf16.mxu0 0
      %510 = vmatpush2.bf16.msra.mxu0 0
      %511 = vmatprep.subr.bf16.mxu0 0
      %512 = vmatpush2.bf16.msra.mxu0 0
      %513 = vmatprep.mubr.bf16.mxu0 0
      %514 = vmatmul.mubr.bf16.gmra.mxu0 %v476
      %v515 = vpop.f32.mrf.mxu0
      %v516 = vadd.f32 0.0, %v515
      %v517 = vpop.f32.mrf.mxu0
      %v518 = vpop.f32.mrf.mxu0
      %v519 = vpop.f32.mrf.mxu0
      %520 = vdwg.mxu0
      %v521 = vadd.f32 %v461, %v516
      %v522 = vunpack.c.h.b16 %v350
      %v523 = vunpack.c.h.b16 %v351
      %v524 = vpack.c.b16 %v523, %v522
      %525 = vrot.lane.b32.xlu0 %v366, 122
      %v526 = vpop.permute.xlu0 %525
      %527 = vrot.lane.b32.xlu0 %v524, 122
      %v528 = vpop.permute.xlu0 %527
      %v529 = vsel %vm473, %v526, %v528
      %v531 = vsel %vm367, %v358, 0
      %v534 = vsel %vm371, %v529, 0
      %536 = vmatprep.subr.bf16.mxu0 0
      %537 = vmatpush1.bf16.msra.mxu0 0
      %538 = vmatprep.subr.bf16.mxu0 0
      %539 = vmatpush1.bf16.msra.mxu0 0
      %540 = vmatprep.subr.bf16.mxu0 0
      %541 = vmatpush1.bf16.msra.mxu0 0
      %542 = vmatprep.subr.bf16.mxu0 0
      %543 = vmatpush1.bf16.msra.mxu0 0
      %544 = vmatprep.subr.bf16.mxu0 0
      %545 = vmatpush1.bf16.msra.mxu0 0
      %546 = vmatprep.subr.bf16.mxu0 0
      %547 = vmatpush1.bf16.msra.mxu0 0
      %548 = vmatprep.subr.bf16.mxu0 0
      %549 = vmatpush1.bf16.msra.mxu0 0
      %550 = vmatprep.subr.bf16.mxu0 0
      %551 = vmatpush1.bf16.msra.mxu0 %v534
      %552 = vmatprep.subr.bf16.mxu0 0
      %553 = vmatpush2.bf16.msra.mxu0 0
      %554 = vmatprep.subr.bf16.mxu0 0
      %555 = vmatpush2.bf16.msra.mxu0 0
      %556 = vmatprep.subr.bf16.mxu0 0
      %557 = vmatpush2.bf16.msra.mxu0 0
      %558 = vmatprep.subr.bf16.mxu0 0
      %559 = vmatpush2.bf16.msra.mxu0 0
      %560 = vmatprep.subr.bf16.mxu0 0
      %561 = vmatpush2.bf16.msra.mxu0 0
      %562 = vmatprep.subr.bf16.mxu0 0
      %563 = vmatpush2.bf16.msra.mxu0 0
      %564 = vmatprep.subr.bf16.mxu0 0
      %565 = vmatpush2.bf16.msra.mxu0 0
      %566 = vmatprep.subr.bf16.mxu0 0
      %567 = vmatpush2.bf16.msra.mxu0 0
      %568 = vmatprep.mubr.bf16.mxu0 0
      %569 = vmatmul.mubr.bf16.gmra.mxu0 %v531
      %v570 = vpop.f32.mrf.mxu0
      %v571 = vadd.f32 0.0, %v570
      %v572 = vpop.f32.mrf.mxu0
      %v573 = vpop.f32.mrf.mxu0
      %v574 = vpop.f32.mrf.mxu0
      %575 = vdwg.mxu0
      %v576 = vadd.f32 %v521, %v571
      %577 = vrot.lane.b32.xlu0 %v419, 116
      %v578 = vpop.permute.xlu0 %577
      %579 = vrot.lane.b32.xlu0 %v468, 116
      %v580 = vpop.permute.xlu0 %579
      %vm581 = vcmask 949248
      %v582 = vsel %vm581, %v578, %v580
      %v584 = vsel %vm367, %v354, 0
      %v587 = vsel %vm371, %v582, 0
      %589 = vmatprep.subr.bf16.mxu0 0
      %590 = vmatpush1.bf16.msra.mxu0 0
      %591 = vmatprep.subr.bf16.mxu0 0
      %592 = vmatpush1.bf16.msra.mxu0 0
      %593 = vmatprep.subr.bf16.mxu0 0
      %594 = vmatpush1.bf16.msra.mxu0 0
      %595 = vmatprep.subr.bf16.mxu0 0
      %596 = vmatpush1.bf16.msra.mxu0 0
      %597 = vmatprep.subr.bf16.mxu0 0
      %598 = vmatpush1.bf16.msra.mxu0 0
      %599 = vmatprep.subr.bf16.mxu0 0
      %600 = vmatpush1.bf16.msra.mxu0 0
      %601 = vmatprep.subr.bf16.mxu0 0
      %602 = vmatpush1.bf16.msra.mxu0 0
      %603 = vmatprep.subr.bf16.mxu0 0
      %604 = vmatpush1.bf16.msra.mxu0 %v587
      %605 = vmatprep.subr.bf16.mxu0 0
      %606 = vmatpush2.bf16.msra.mxu0 0
      %607 = vmatprep.subr.bf16.mxu0 0
      %608 = vmatpush2.bf16.msra.mxu0 0
      %609 = vmatprep.subr.bf16.mxu0 0
      %610 = vmatpush2.bf16.msra.mxu0 0
      %611 = vmatprep.subr.bf16.mxu0 0
      %612 = vmatpush2.bf16.msra.mxu0 0
      %613 = vmatprep.subr.bf16.mxu0 0
      %614 = vmatpush2.bf16.msra.mxu0 0
      %615 = vmatprep.subr.bf16.mxu0 0
      %616 = vmatpush2.bf16.msra.mxu0 0
      %617 = vmatprep.subr.bf16.mxu0 0
      %618 = vmatpush2.bf16.msra.mxu0 0
      %619 = vmatprep.subr.bf16.mxu0 0
      %620 = vmatpush2.bf16.msra.mxu0 0
      %621 = vmatprep.mubr.bf16.mxu0 0
      %622 = vmatmul.mubr.bf16.gmra.mxu0 %v584
      %v623 = vpop.f32.mrf.mxu0
      %v624 = vadd.f32 0.0, %v623
      %v625 = vpop.f32.mrf.mxu0
      %v626 = vpop.f32.mrf.mxu0
      %v627 = vpop.f32.mrf.mxu0
      %628 = vdwg.mxu0
      %v629 = vadd.f32 %v576, %v624
      %630 = vrot.lane.b32.xlu0 %v366, 116
      %v631 = vpop.permute.xlu0 %630
      %632 = vrot.lane.b32.xlu0 %v524, 116
      %v633 = vpop.permute.xlu0 %632
      %v634 = vsel %vm581, %v631, %v633
      %v636 = vsel %vm367, %v359, 0
      %v639 = vsel %vm371, %v634, 0
      %641 = vmatprep.subr.bf16.mxu0 0
      %642 = vmatpush1.bf16.msra.mxu0 0
      %643 = vmatprep.subr.bf16.mxu0 0
      %644 = vmatpush1.bf16.msra.mxu0 0
      %645 = vmatprep.subr.bf16.mxu0 0
      %646 = vmatpush1.bf16.msra.mxu0 0
      %647 = vmatprep.subr.bf16.mxu0 0
      %648 = vmatpush1.bf16.msra.mxu0 0
      %649 = vmatprep.subr.bf16.mxu0 0
      %650 = vmatpush1.bf16.msra.mxu0 0
      %651 = vmatprep.subr.bf16.mxu0 0
      %652 = vmatpush1.bf16.msra.mxu0 0
      %653 = vmatprep.subr.bf16.mxu0 0
      %654 = vmatpush1.bf16.msra.mxu0 0
      %655 = vmatprep.subr.bf16.mxu0 0
      %656 = vmatpush1.bf16.msra.mxu0 %v639
      %657 = vmatprep.subr.bf16.mxu0 0
      %658 = vmatpush2.bf16.msra.mxu0 0
      %659 = vmatprep.subr.bf16.mxu0 0
      %660 = vmatpush2.bf16.msra.mxu0 0
      %661 = vmatprep.subr.bf16.mxu0 0
      %662 = vmatpush2.bf16.msra.mxu0 0
      %663 = vmatprep.subr.bf16.mxu0 0
      %664 = vmatpush2.bf16.msra.mxu0 0
      %665 = vmatprep.subr.bf16.mxu0 0
      %666 = vmatpush2.bf16.msra.mxu0 0
      %667 = vmatprep.subr.bf16.mxu0 0
      %668 = vmatpush2.bf16.msra.mxu0 0
      %669 = vmatprep.subr.bf16.mxu0 0
      %670 = vmatpush2.bf16.msra.mxu0 0
      %671 = vmatprep.subr.bf16.mxu0 0
      %672 = vmatpush2.bf16.msra.mxu0 0
      %673 = vmatprep.mubr.bf16.mxu0 0
      %674 = vmatmul.mubr.bf16.gmra.mxu0 %v636
      %v675 = vpop.f32.mrf.mxu0
      %v676 = vadd.f32 0.0, %v675
      %v677 = vpop.f32.mrf.mxu0
      %v678 = vpop.f32.mrf.mxu0
      %v679 = vpop.f32.mrf.mxu0
      %680 = vdwg.mxu0
      %v681 = vadd.f32 %v629, %v676
      %682 = vrot.lane.b32.xlu0 %v419, 110
      %v683 = vpop.permute.xlu0 %682
      %684 = vrot.lane.b32.xlu0 %v468, 110
      %v685 = vpop.permute.xlu0 %684
      %vm686 = vcmask 900096
      %v687 = vsel %vm686, %v683, %v685
      %v689 = vsel %vm367, %v355, 0
      %v692 = vsel %vm371, %v687, 0
      %694 = vmatprep.subr.bf16.mxu0 0
      %695 = vmatpush1.bf16.msra.mxu0 0
      %696 = vmatprep.subr.bf16.mxu0 0
      %697 = vmatpush1.bf16.msra.mxu0 0
      %698 = vmatprep.subr.bf16.mxu0 0
      %699 = vmatpush1.bf16.msra.mxu0 0
      %700 = vmatprep.subr.bf16.mxu0 0
      %701 = vmatpush1.bf16.msra.mxu0 0
      %702 = vmatprep.subr.bf16.mxu0 0
      %703 = vmatpush1.bf16.msra.mxu0 0
      %704 = vmatprep.subr.bf16.mxu0 0
      %705 = vmatpush1.bf16.msra.mxu0 0
      %706 = vmatprep.subr.bf16.mxu0 0
      %707 = vmatpush1.bf16.msra.mxu0 0
      %708 = vmatprep.subr.bf16.mxu0 0
      %709 = vmatpush1.bf16.msra.mxu0 %v692
      %710 = vmatprep.subr.bf16.mxu0 0
      %711 = vmatpush2.bf16.msra.mxu0 0
      %712 = vmatprep.subr.bf16.mxu0 0
      %713 = vmatpush2.bf16.msra.mxu0 0
      %714 = vmatprep.subr.bf16.mxu0 0
      %715 = vmatpush2.bf16.msra.mxu0 0
      %716 = vmatprep.subr.bf16.mxu0 0
      %717 = vmatpush2.bf16.msra.mxu0 0
      %718 = vmatprep.subr.bf16.mxu0 0
      %719 = vmatpush2.bf16.msra.mxu0 0
      %720 = vmatprep.subr.bf16.mxu0 0
      %721 = vmatpush2.bf16.msra.mxu0 0
      %722 = vmatprep.subr.bf16.mxu0 0
      %723 = vmatpush2.bf16.msra.mxu0 0
      %724 = vmatprep.subr.bf16.mxu0 0
      %725 = vmatpush2.bf16.msra.mxu0 0
      %726 = vmatprep.mubr.bf16.mxu0 0
      %727 = vmatmul.mubr.bf16.gmra.mxu0 %v689
      %v728 = vpop.f32.mrf.mxu0
      %v729 = vadd.f32 0.0, %v728
      %v730 = vpop.f32.mrf.mxu0
      %v731 = vpop.f32.mrf.mxu0
      %v732 = vpop.f32.mrf.mxu0
      %733 = vdwg.mxu0
      %v734 = vadd.f32 %v681, %v729
      %735 = vrot.lane.b32.xlu0 %v366, 110
      %v736 = vpop.permute.xlu0 %735
      %737 = vrot.lane.b32.xlu0 %v524, 110
      %v738 = vpop.permute.xlu0 %737
      %v739 = vsel %vm686, %v736, %v738
      %v741 = vsel %vm367, %v360, 0
      %v744 = vsel %vm371, %v739, 0
      %746 = vmatprep.subr.bf16.mxu0 0
      %747 = vmatpush1.bf16.msra.mxu0 0
      %748 = vmatprep.subr.bf16.mxu0 0
      %749 = vmatpush1.bf16.msra.mxu0 0
      %750 = vmatprep.subr.bf16.mxu0 0
      %751 = vmatpush1.bf16.msra.mxu0 0
      %752 = vmatprep.subr.bf16.mxu0 0
      %753 = vmatpush1.bf16.msra.mxu0 0
      %754 = vmatprep.subr.bf16.mxu0 0
      %755 = vmatpush1.bf16.msra.mxu0 0
      %756 = vmatprep.subr.bf16.mxu0 0
      %757 = vmatpush1.bf16.msra.mxu0 0
      %758 = vmatprep.subr.bf16.mxu0 0
      %759 = vmatpush1.bf16.msra.mxu0 0
      %760 = vmatprep.subr.bf16.mxu0 0
      %761 = vmatpush1.bf16.msra.mxu0 %v744
      %762 = vmatprep.subr.bf16.mxu0 0
      %763 = vmatpush2.bf16.msra.mxu0 0
      %764 = vmatprep.subr.bf16.mxu0 0
      %765 = vmatpush2.bf16.msra.mxu0 0
      %766 = vmatprep.subr.bf16.mxu0 0
      %767 = vmatpush2.bf16.msra.mxu0 0
      %768 = vmatprep.subr.bf16.mxu0 0
      %769 = vmatpush2.bf16.msra.mxu0 0
      %770 = vmatprep.subr.bf16.mxu0 0
      %771 = vmatpush2.bf16.msra.mxu0 0
      %772 = vmatprep.subr.bf16.mxu0 0
      %773 = vmatpush2.bf16.msra.mxu0 0
      %774 = vmatprep.subr.bf16.mxu0 0
      %775 = vmatpush2.bf16.msra.mxu0 0
      %776 = vmatprep.subr.bf16.mxu0 0
      %777 = vmatpush2.bf16.msra.mxu0 0
      %778 = vmatprep.mubr.bf16.mxu0 0
      %779 = vmatmul.mubr.bf16.gmra.mxu0 %v741
      %v780 = vpop.f32.mrf.mxu0
      %v781 = vadd.f32 0.0, %v780
      %v782 = vpop.f32.mrf.mxu0
      %v783 = vpop.f32.mrf.mxu0
      %v784 = vpop.f32.mrf.mxu0
      %785 = vdwg.mxu0
      %v786 = vadd.f32 %v734, %v781
      %787 = vrot.lane.b32.xlu0 %v419, 104
      %v788 = vpop.permute.xlu0 %787
      %789 = vrot.lane.b32.xlu0 %v468, 104
      %v790 = vpop.permute.xlu0 %789
      %vm791 = vcmask 850944
      %v792 = vsel %vm791, %v788, %v790
      %v794 = vsel %vm367, %v356, 0
      %v797 = vsel %vm371, %v792, 0
      %799 = vmatprep.subr.bf16.mxu0 0
      %800 = vmatpush1.bf16.msra.mxu0 0
      %801 = vmatprep.subr.bf16.mxu0 0
      %802 = vmatpush1.bf16.msra.mxu0 0
      %803 = vmatprep.subr.bf16.mxu0 0
      %804 = vmatpush1.bf16.msra.mxu0 0
      %805 = vmatprep.subr.bf16.mxu0 0
      %806 = vmatpush1.bf16.msra.mxu0 0
      %807 = vmatprep.subr.bf16.mxu0 0
      %808 = vmatpush1.bf16.msra.mxu0 0
      %809 = vmatprep.subr.bf16.mxu0 0
      %810 = vmatpush1.bf16.msra.mxu0 0
      %811 = vmatprep.subr.bf16.mxu0 0
      %812 = vmatpush1.bf16.msra.mxu0 0
      %813 = vmatprep.subr.bf16.mxu0 0
      %814 = vmatpush1.bf16.msra.mxu0 %v797
      %815 = vmatprep.subr.bf16.mxu0 0
      %816 = vmatpush2.bf16.msra.mxu0 0
      %817 = vmatprep.subr.bf16.mxu0 0
      %818 = vmatpush2.bf16.msra.mxu0 0
      %819 = vmatprep.subr.bf16.mxu0 0
      %820 = vmatpush2.bf16.msra.mxu0 0
      %821 = vmatprep.subr.bf16.mxu0 0
      %822 = vmatpush2.bf16.msra.mxu0 0
      %823 = vmatprep.subr.bf16.mxu0 0
      %824 = vmatpush2.bf16.msra.mxu0 0
      %825 = vmatprep.subr.bf16.mxu0 0
      %826 = vmatpush2.bf16.msra.mxu0 0
      %827 = vmatprep.subr.bf16.mxu0 0
      %828 = vmatpush2.bf16.msra.mxu0 0
      %829 = vmatprep.subr.bf16.mxu0 0
      %830 = vmatpush2.bf16.msra.mxu0 0
      %831 = vmatprep.mubr.bf16.mxu0 0
      %832 = vmatmul.mubr.bf16.gmra.mxu0 %v794
      %v833 = vpop.f32.mrf.mxu0
      %v834 = vadd.f32 0.0, %v833
      %v835 = vpop.f32.mrf.mxu0
      %v836 = vpop.f32.mrf.mxu0
      %v837 = vpop.f32.mrf.mxu0
      %838 = vdwg.mxu0
      %v839 = vadd.f32 %v786, %v834
      %840 = vrot.lane.b32.xlu0 %v366, 104
      %v841 = vpop.permute.xlu0 %840
      %842 = vrot.lane.b32.xlu0 %v524, 104
      %v843 = vpop.permute.xlu0 %842
      %v844 = vsel %vm791, %v841, %v843
      %v846 = vsel %vm367, %v361, 0
      %v849 = vsel %vm371, %v844, 0
      %851 = vmatprep.subr.bf16.mxu0 0
      %852 = vmatpush1.bf16.msra.mxu0 0
      %853 = vmatprep.subr.bf16.mxu0 0
      %854 = vmatpush1.bf16.msra.mxu0 0
      %855 = vmatprep.subr.bf16.mxu0 0
      %856 = vmatpush1.bf16.msra.mxu0 0
      %857 = vmatprep.subr.bf16.mxu0 0
      %858 = vmatpush1.bf16.msra.mxu0 0
      %859 = vmatprep.subr.bf16.mxu0 0
      %860 = vmatpush1.bf16.msra.mxu0 0
      %861 = vmatprep.subr.bf16.mxu0 0
      %862 = vmatpush1.bf16.msra.mxu0 0
      %863 = vmatprep.subr.bf16.mxu0 0
      %864 = vmatpush1.bf16.msra.mxu0 0
      %865 = vmatprep.subr.bf16.mxu0 0
      %866 = vmatpush1.bf16.msra.mxu0 %v849
      %867 = vmatprep.subr.bf16.mxu0 0
      %868 = vmatpush2.bf16.msra.mxu0 0
      %869 = vmatprep.subr.bf16.mxu0 0
      %870 = vmatpush2.bf16.msra.mxu0 0
      %871 = vmatprep.subr.bf16.mxu0 0
      %872 = vmatpush2.bf16.msra.mxu0 0
      %873 = vmatprep.subr.bf16.mxu0 0
      %874 = vmatpush2.bf16.msra.mxu0 0
      %875 = vmatprep.subr.bf16.mxu0 0
      %876 = vmatpush2.bf16.msra.mxu0 0
      %877 = vmatprep.subr.bf16.mxu0 0
      %878 = vmatpush2.bf16.msra.mxu0 0
      %879 = vmatprep.subr.bf16.mxu0 0
      %880 = vmatpush2.bf16.msra.mxu0 0
      %881 = vmatprep.subr.bf16.mxu0 0
      %882 = vmatpush2.bf16.msra.mxu0 0
      %883 = vmatprep.mubr.bf16.mxu0 0
      %884 = vmatmul.mubr.bf16.gmra.mxu0 %v846
      %v885 = vpop.f32.mrf.mxu0
      %v886 = vadd.f32 0.0, %v885
      %v887 = vpop.f32.mrf.mxu0
      %v888 = vpop.f32.mrf.mxu0
      %v889 = vpop.f32.mrf.mxu0
      %890 = vdwg.mxu0
      %v891 = vadd.f32 %v839, %v886
      %vm892 = vcmp.gt.f32.partialorder %v891, 0.0
      %v893 = vstv %s347
      %v894 = vmul.f32 %v893, %v891
      %v895 = vsel %vm892, %v891, %v894
      %v896 = vld [vmem:[%s3] sm:$0x3]
      %v897 = vpack.c.bf16 %v895, %v895
      %v898 = vld [vmem:[%s4] sm:$0xf]
      %900 = vset.pattern.permute.xlu0 0
      %901 = vperm.xlu0 %900, %v898
      %v902 = vpop.permute.xlu0 %901
      %vm904 = vcmask 64512
      %v906 = vsel %vm904, %v896, 0
      %vm908 = vcmask 1043456
      %v910 = vsel %vm908, %v897, 0
      %912 = vmatprep.subr.bf16.mxu0 0
      %913 = vmatpush1.bf16.msra.mxu0 0
      %914 = vmatprep.subr.bf16.mxu0 0
      %915 = vmatpush1.bf16.msra.mxu0 0
      %916 = vmatprep.subr.bf16.mxu0 0
      %917 = vmatpush1.bf16.msra.mxu0 0
      %918 = vmatprep.subr.bf16.mxu0 0
      %919 = vmatpush1.bf16.msra.mxu0 0
      %920 = vmatprep.subr.bf16.mxu0 0
      %921 = vmatpush1.bf16.msra.mxu0 0
      %922 = vmatprep.subr.bf16.mxu0 0
      %923 = vmatpush1.bf16.msra.mxu0 0
      %924 = vmatprep.subr.bf16.mxu0 0
      %925 = vmatpush1.bf16.msra.mxu0 0
      %926 = vmatprep.subr.bf16.mxu0 0
      %927 = vmatpush1.bf16.msra.mxu0 %v910
      %928 = vmatprep.subr.bf16.mxu0 0
      %929 = vmatpush2.bf16.msra.mxu0 0
      %930 = vmatprep.subr.bf16.mxu0 0
      %931 = vmatpush2.bf16.msra.mxu0 0
      %932 = vmatprep.subr.bf16.mxu0 0
      %933 = vmatpush2.bf16.msra.mxu0 0
      %934 = vmatprep.subr.bf16.mxu0 0
      %935 = vmatpush2.bf16.msra.mxu0 0
      %936 = vmatprep.subr.bf16.mxu0 0
      %937 = vmatpush2.bf16.msra.mxu0 0
      %938 = vmatprep.subr.bf16.mxu0 0
      %939 = vmatpush2.bf16.msra.mxu0 0
      %940 = vmatprep.subr.bf16.mxu0 0
      %941 = vmatpush2.bf16.msra.mxu0 0
      %942 = vmatprep.subr.bf16.mxu0 0
      %943 = vmatpush2.bf16.msra.mxu0 0
      %944 = vmatprep.mubr.bf16.mxu0 0
      %945 = vmatmul.mubr.bf16.gmra.mxu0 %v906
      %v946 = vpop.f32.mrf.mxu0
      %v947 = vadd.f32 %v902, %v946
      %v948 = vpop.f32.mrf.mxu0
      %v949 = vpop.f32.mrf.mxu0
      %v950 = vpop.f32.mrf.mxu0
      %951 = vdwg.mxu0
      %v952 = vmax.f32 %v947, 0.0
      %953 = vst [vmem:[%s345] sm:$0xf] %v952
      %p954 = scmp.lt.s32.totalorder %s23, 1
      %s955 = scalar_select %p954, %s23, 1
      %p956 = scmp.lt.s32.totalorder %s24, 0
      %s957 = scalar_select %p956, %s24, 0
      %s958 = sadd.s32 %s957, %s955
      %s959 = smul.addr %s958, 4
      %s960 = scalar_lea.vmem %s7, %s959
      // Predicated region
      $region49: #{dprnn_me_forward.1} parent=47 // pred_check
        %p961 = pneg %p212
      $region50: #{dprnn_me_forward.1} parent=47 // pred_check_branch
        %963 = sbr.rel (%p961) target = $region52
      $region51: #{dprnn_me_forward.1} parent=47 // pred_region
        _
      $region52: #{dprnn_me_forward.1} parent=47 // pred_fallthru
        _
    $region48: #{dprnn_me_forward.1} parent=5 // pred_fallthru
      _
    %p964 = scmp.le.s32.totalorder 2, %s14
    // Predicated region
    $region53: #{dprnn_me_forward.1} parent=5 // pred_check
      %p965 = pneg %p964
    $region54: #{dprnn_me_forward.1} parent=5 // pred_check_branch
      %967 = sbr.rel (%p965) target = $region56
    $region55: #{dprnn_me_forward.1} parent=5 // pred_region
      %s968 = ssub.s32 %s14, 2
      // Predicated region
      $region57: #{dprnn_me_forward.1} parent=55 // pred_check
        %p969 = pneg %p218
      $region58: #{dprnn_me_forward.1} parent=55 // pred_check_branch
        %971 = sbr.rel (%p969) target = $region60
      $region59: #{dprnn_me_forward.1} parent=55 // pred_region
        %p972 = scmp.lt.s32.totalorder %s25, 1
        %s973 = scalar_select %p972, %s25, 1
        %p974 = scmp.lt.s32.totalorder %s26, 0
        %s975 = scalar_select %p974, %s26, 0
        %s976 = sadd.s32 %s975, %s973
        %s977 = smul.addr %s976, 4
        %s978 = scalar_lea.vmem %s7, %s977
      $region60: #{dprnn_me_forward.1} parent=55 // pred_fallthru
        _
    $region56: #{dprnn_me_forward.1} parent=5 // pred_fallthru
      _
  $region6: #{dprnn_me_forward.1} parent=0 // loop_footer
    %s18 = sadd.s32 1, %s14
  $region7: #{dprnn_me_forward.1} parent=0 // loop_footer_branch
    %13 = sbr.rel target = $region3
  $region8: #{dprnn_me_forward.1} parent=0 // loop_exit
    _

</llo_original>
